<compile_context>
chip_gen: v7x
topology: tpu7x:2x2x1
jax: 0.10.0
libtpu: 0.0.40
codegen_flags: <defaults>
</compile_context>

<pallas_src>
import functools

import jax
import jax.numpy as jnp
from jax.experimental import pallas as pl
from jax.experimental.pallas import tpu as pltpu


# ----------------------------------------------------------------------------
# Pallas kernel: fused 1x1-conv heads, NCHW-native
#   x_ref: (C_IN, T)   w_ref: (C_OUT_PAD, C_IN)   b_ref: (C_OUT_PAD, 1)
#   o_ref: (C_OUT_PAD, T)
# ----------------------------------------------------------------------------
def _heads_kernel(x_ref, w_ref, b_ref, o_ref):
    acc = jnp.dot(w_ref[...], x_ref[...], preferred_element_type=jnp.float32)
    o_ref[...] = (acc + b_ref[...]).astype(o_ref.dtype)


def _choose_spatial_tile(hw, cap=2048):
    """Lane-dense spatial tile.  Full extent if it fits, else a 128-multiple."""
    if hw <= cap:
        return hw                 # block == full array extent (always legal)
    return cap                    # cap is a multiple of 128; cdiv handles tail


def _heads_matmul(x3d, w, b, *, t_hw):
    """x3d: (B, C_in, HW), w: (C_out_pad, C_in), b: (C_out_pad, 1)
       -> (B, C_out_pad, HW)."""
    B, c_in, hw = x3d.shape
    c_out = w.shape[0]
    grid = (B, pl.cdiv(hw, t_hw))

    return pl.pallas_call(
        _heads_kernel,
        out_shape=jax.ShapeDtypeStruct((B, c_out, hw), x3d.dtype),
        grid_spec=pltpu.PrefetchScalarGridSpec(
            num_scalar_prefetch=0,
            grid=grid,
            in_specs=[
                # Activations: one (384, t_hw) slab per (batch, spatial tile).
                pl.BlockSpec((None, c_in, t_hw), lambda bi, si: (bi, 0, si)),
                # Weights / bias: resident across the whole grid.
                pl.BlockSpec((c_out, c_in), lambda bi, si: (0, 0)),
                pl.BlockSpec((c_out, 1), lambda bi, si: (0, 0)),
            ],
            out_specs=pl.BlockSpec((None, c_out, t_hw), lambda bi, si: (bi, 0, si)),
        ),
        compiler_params=pltpu.CompilerParams(
            # Both axes independent -> megacore sharding on v7x.
            dimension_semantics=("parallel", "parallel"),
        ),
    )(x3d, w, b)


@functools.partial(jax.jit, static_argnames=("cls_out", "reg_out"))
def _forward(x_nchw, w_all, b_all, *, cls_out, reg_out):
    B, C, H, W = x_nchw.shape
    hw = H * W
    t_hw = _choose_spatial_tile(hw)
    x3d = x_nchw.reshape(B, C, hw)                 # metadata-only reshape
    out3d = _heads_matmul(x3d, w_all, b_all, t_hw=t_hw)
    out = out3d.reshape(B, -1, H, W)               # NCHW, padded channels
    psm = out[:, :cls_out]
    rm = out[:, cls_out:cls_out + reg_out]
    return psm, rm


# ----------------------------------------------------------------------------
# Module wrapper (parameters initialized deterministically in-script)
# ----------------------------------------------------------------------------
class PointPillarIntermediateHeads:
    """psm = cls_head(x), rm = reg_head(x); both 1x1 Conv2d on 384 channels."""

    C_IN = 128 * 3  # 384, fixed by the module definition

    def __init__(self, anchor_number: int, anchor_num: int, key):
        self.cls_out = anchor_number
        self.reg_out = 7 * anchor_num
        k1, k2, k3, k4 = jax.random.split(key, 4)
        # Deterministic init (kaiming-uniform-ish bound, like nn.Conv2d default)
        bound = 1.0 / (self.C_IN ** 0.5)
        # Stored in PyTorch conv layout: (out_channels, in_channels)
        self.w_cls = jax.random.uniform(
            k1, (self.cls_out, self.C_IN), jnp.float32, -bound, bound)
        self.b_cls = jax.random.uniform(
            k2, (self.cls_out,), jnp.float32, -bound, bound)
        self.w_reg = jax.random.uniform(
            k3, (self.reg_out, self.C_IN), jnp.float32, -bound, bound)
        self.b_reg = jax.random.uniform(
            k4, (self.reg_out,), jnp.float32, -bound, bound)

        # Fuse both heads into one matmul and pad the output-channel dim to a
        # multiple of 8 (sublane) so the fused output block is tileable.
        c_out = self.cls_out + self.reg_out
        c_out_pad = -(-c_out // 8) * 8
        w_all = jnp.concatenate([self.w_cls, self.w_reg], axis=0)
        b_all = jnp.concatenate([self.b_cls, self.b_reg], axis=0)
        if c_out_pad != c_out:
            w_all = jnp.pad(w_all, ((0, c_out_pad - c_out), (0, 0)))
            b_all = jnp.pad(b_all, (0, c_out_pad - c_out))
        self.w_all = w_all                     # (c_out_pad, 384)
        self.b_all = b_all.reshape(-1, 1)      # (c_out_pad, 1)

    def __call__(self, spatial_features_2d):
        """spatial_features_2d: NCHW (B, 384, H, W) float32."""
        B, C, H, W = spatial_features_2d.shape
        assert C == self.C_IN
        psm, rm = _forward(spatial_features_2d, self.w_all, self.b_all,
                           cls_out=self.cls_out, reg_out=self.reg_out)
        out_contrast_loss_ = 0  # non-iterative-training path
        return {"psm": psm, "rm": rm, "out_contrast_loss": out_contrast_loss_}


# ----------------------------------------------------------------------------
# Demo / self-check
# ----------------------------------------------------------------------------
if __name__ == "__main__":
    key = jax.random.PRNGKey(0)
    k_in, k_par = jax.random.split(key)

    # Small shapes consistent with the module: B=2, C=384 (fixed), H=W=16.
    B, C, H, W = 2, 128 * 3, 16, 16
    anchor_number, anchor_num = 2, 2

    spatial_features_2d = jax.random.normal(k_in, (B, C, H, W), jnp.float32)

    model = PointPillarIntermediateHeads(anchor_number, anchor_num, k_par)
    out = model(spatial_features_2d)
    psm = jax.block_until_ready(out["psm"])
    rm = jax.block_until_ready(out["rm"])

    # Pure-JAX reference (1x1 conv == einsum over channel dim), NCHW.
    psm_ref = (jnp.einsum("bchw,oc->bohw", spatial_features_2d, model.w_cls)
               + model.b_cls.reshape(1, -1, 1, 1))
    rm_ref = (jnp.einsum("bchw,oc->bohw", spatial_features_2d, model.w_reg)
              + model.b_reg.reshape(1, -1, 1, 1))

    assert psm.shape == (B, anchor_number, H, W)
    assert rm.shape == (B, 7 * anchor_num, H, W)
    assert jnp.allclose(psm, psm_ref, atol=1e-4, rtol=1e-4)
    assert jnp.allclose(rm, rm_ref, atol=1e-4, rtol=1e-4)
    assert out["out_contrast_loss"] == 0

    print("KERNEL_OK")
</pallas_src>

<mosaic_0001>
module attributes {stable_mosaic.version = 11 : i64} {
  func.func @_heads_kernel(%arg0: i32, %arg1: i32, %arg2: memref<1x384x256xf32, #tpu.memory_space<vmem>>, %arg3: memref<16x384xf32, #tpu.memory_space<vmem>>, %arg4: memref<16x1xf32, #tpu.memory_space<vmem>>, %arg5: memref<1x16x256xf32, #tpu.memory_space<vmem>>) attributes {dimension_semantics = [#tpu.dimension_semantics<parallel>, #tpu.dimension_semantics<parallel>], iteration_bounds = array<i64: 2, 1>, scalar_prefetch = 0 : i64, scratch_operands = 0 : i64, tpu.core_type = #tpu.core_type<tc>, window_params = [{transform_indices = @transform_0, window_bounds = array<i64: 1, 384, 256>}, {pipeline_mode = #tpu.pipeline_mode<synchronous>, transform_indices = @transform_1, window_bounds = array<i64: 16, 384>}, {pipeline_mode = #tpu.pipeline_mode<synchronous>, transform_indices = @transform_2, window_bounds = array<i64: 16, 1>}, {transform_indices = @transform_3, window_bounds = array<i64: 1, 16, 256>}]} {
    %c0 = arith.constant 0 : index
    %c0_0 = arith.constant 0 : index
    %0 = vector.load %arg3[%c0, %c0_0] : memref<16x384xf32, #tpu.memory_space<vmem>>, vector<16x384xf32>
    %c0_1 = arith.constant 0 : index
    %c0_2 = arith.constant 0 : index
    %c0_3 = arith.constant 0 : index
    %1 = vector.load %arg2[%c0_1, %c0_2, %c0_3] : memref<1x384x256xf32, #tpu.memory_space<vmem>>, vector<1x384x256xf32>
    %2 = vector.shape_cast %1 : vector<1x384x256xf32> to vector<384x256xf32>
    %cst = arith.constant dense<0.000000e+00> : vector<16x256xf32>
    %3 = tpu.matmul %0, %2, %cst {dimension_numbers = #tpu.dot_dimension_numbers<[1], [0], [0], [1], [0, 0, 1, 1], [], []>} : vector<16x384xf32>, vector<384x256xf32>, vector<16x256xf32> -> vector<16x256xf32>
    %c0_4 = arith.constant 0 : index
    %c0_5 = arith.constant 0 : index
    %4 = vector.load %arg4[%c0_4, %c0_5] : memref<16x1xf32, #tpu.memory_space<vmem>>, vector<16x1xf32>
    %5 = vector.broadcast %4 : vector<16x1xf32> to vector<16x256xf32>
    %6 = arith.addf %3, %5 : vector<16x256xf32>
    %c0_6 = arith.constant 0 : index
    %c0_7 = arith.constant 0 : index
    %c0_8 = arith.constant 0 : index
    %7 = vector.load %arg5[%c0_6, %c0_7, %c0_8] : memref<1x16x256xf32, #tpu.memory_space<vmem>>, vector<1x16x256xf32>
    %8 = vector.shape_cast %7 : vector<1x16x256xf32> to vector<16x256xf32>
    %9 = vector.shape_cast %6 : vector<16x256xf32> to vector<1x16x256xf32>
    tpu.vector_store %arg5[%c0_6, %c0_7, %c0_8], %9 {strides = array<i32>} : memref<1x16x256xf32, #tpu.memory_space<vmem>>, vector<1x16x256xf32>,
    return
  }
  func.func @transform_0(%arg0: i32, %arg1: i32) -> (i32, i32, i32) {
    %c0_i32 = arith.constant 0 : i32
    %c0_i32_0 = arith.constant 0 : i32
    return %arg0, %c0_i32, %arg1 : i32, i32, i32
  }
  func.func @transform_1(%arg0: i32, %arg1: i32) -> (i32, i32) {
    %c0_i32 = arith.constant 0 : i32
    %c0_i32_0 = arith.constant 0 : i32
    %c0_i32_1 = arith.constant 0 : i32
    return %c0_i32, %c0_i32_0 : i32, i32
  }
  func.func @transform_2(%arg0: i32, %arg1: i32) -> (i32, i32) {
    %c0_i32 = arith.constant 0 : i32
    %c0_i32_0 = arith.constant 0 : i32
    %c0_i32_1 = arith.constant 0 : i32
    return %c0_i32, %c0_i32_0 : i32, i32
  }
  func.func @transform_3(%arg0: i32, %arg1: i32) -> (i32, i32, i32) {
    %c0_i32 = arith.constant 0 : i32
    %c0_i32_0 = arith.constant 0 : i32
    return %arg0, %c0_i32, %arg1 : i32, i32, i32
  }
}

</mosaic_0001>

<llo_original>
// kernel: _forward.1
$region0: #{_forward.1}
  #allocation0 [shape = 'u32[]', space=smem, size = 0x4, offset = 0x4, fixed_abs, tag = 'smem constant byte address 0x4 - core index']
  #allocation1 [shape = 'u32[144,128]{1,0:T(1,128)}', space=vmem, size = 0x12000, scoped, tag = 'internal scratch']
  %s0 = inlined_call_operand.vmem [shape: f32[2,384,256], index: 0, kind: input, shape index: {}]
  %s1 = inlined_call_operand.vmem [shape: f32[16,384], index: 1, kind: input, shape index: {}]
  %s2 = inlined_call_operand.vmem [shape: f32[16,1], index: 2, kind: input, shape index: {}]
  %s3 = inlined_call_operand.vmem [shape: f32[2,16,256], index: 3, kind: output, shape index: {}]
  %s4 = sld [smem:[#allocation0]]
  $region45: #{_forward.1} parent=0
    _
  %s6 = ssub.s32 1, %s4
  %s7 = scalar_select 0, %s6, %s4
  loop: start=0, step=1, limit=4
  $region2: #{_forward.1} parent=0 // loop_pre_header
    _
  $region3: #{_forward.1} parent=0 // loop_header
    %s9 = sphi 0, %s13
    %p10 = scmp.ge.s32.totalorder %s9, 4
    %s16 = sphi 0, %s28
    %s17 = sphi 0, %s24
    %s18 = sphi 0, %s16
    %s19 = sphi 0, %s17
    %s20 = sphi 0, %s18
    %s21 = sphi 0, %s19
    %s33 = sphi 0, %s35
    %s36 = sphi 0, %s33
    %s37 = sphi 0, %s36
    %s53 = sphi 0, %s37
    %s57 = sphi 0, %s57
    %s59 = sphi 0, %s57
    %s60 = sphi 0, %s59
    %s74 = sphi 0, %s60
    %s78 = sphi 0, %s78
    %s80 = sphi 0, %s78
    %s81 = sphi 0, %s80
    %s95 = sphi 0, %s81
    %s103 = sphi 0, %s105
    %s106 = sphi 0, %s103
    %s107 = sphi 0, %s106
    %s123 = sphi 0, %s107
  $region4: #{_forward.1} parent=0 // loop_header_branch
    %12 = sbr.rel (%p10) target = $region8
  $region5: #{_forward.1} parent=0 // loop_body
    %s14 = ssub.s32 %s9, 1
    %s15 = ssub.s32 %s9, 2
    %s22 = sadd.s32 1, %s17
    %p23 = scmp.ge.s32.totalorder %s22, 1
    %s24 = scalar_select %p23, 0, %s22
    %s25 = sadd.s32 1, %s16
    %s26 = scalar_select %p23, %s25, %s16
    %p27 = scmp.ge.s32.totalorder %s26, 2
    %s28 = scalar_select %p27, 0, %s26
    %s29 = ssub.s32 %s16, %s28
    %s30 = ssub.s32 %s17, %s24
    %s31 = sor.u32 %s29, %s30
    %p32 = scmp.eq.s32.totalorder %s31, 0
    %s34 = sadd.s32 %s33, 1
    %s35 = scalar_select %p32, %s33, %s34
    %p38 = pneg %p32
    %p39 = scmp.eq.s32.totalorder %s9, 1
    %p40 = por %p38, %p39
    %p41 = scmp.ne.s32.totalorder %s33, %s36
    %p42 = scmp.eq.s32.totalorder %s9, 0
    %p43 = por %p41, %p42
    %p44 = scmp.ne.s32.totalorder %s33, %s36
    %p45 = scmp.eq.s32.totalorder %s14, 1
    %p46 = por %p44, %p45
    %p47 = scmp.ne.s32.totalorder %s36, %s37
    %p48 = scmp.eq.s32.totalorder %s14, 0
    %p49 = por %p47, %p48
    %p50 = scmp.ne.s32.totalorder %s36, %s37
    %p51 = scmp.eq.s32.totalorder %s15, 1
    %p52 = por %p50, %p51
    %p54 = scmp.ne.s32.totalorder %s37, %s53
    %p55 = scmp.eq.s32.totalorder %s15, 0
    %p56 = por %p54, %p55
    %s58 = sadd.s32 %s57, 1
    %p61 = scmp.eq.s32.totalorder %s9, 1
    %p62 = scmp.ne.s32.totalorder %s57, %s59
    %p63 = scmp.eq.s32.totalorder %s9, 0
    %p64 = por %p62, %p63
    %p65 = scmp.ne.s32.totalorder %s57, %s59
    %p66 = scmp.eq.s32.totalorder %s14, 1
    %p67 = por %p65, %p66
    %p68 = scmp.ne.s32.totalorder %s59, %s60
    %p69 = scmp.eq.s32.totalorder %s14, 0
    %p70 = por %p68, %p69
    %p71 = scmp.ne.s32.totalorder %s59, %s60
    %p72 = scmp.eq.s32.totalorder %s15, 1
    %p73 = por %p71, %p72
    %p75 = scmp.ne.s32.totalorder %s60, %s74
    %p76 = scmp.eq.s32.totalorder %s15, 0
    %p77 = por %p75, %p76
    %s79 = sadd.s32 %s78, 1
    %p82 = scmp.eq.s32.totalorder %s9, 1
    %p83 = scmp.ne.s32.totalorder %s78, %s80
    %p84 = scmp.eq.s32.totalorder %s9, 0
    %p85 = por %p83, %p84
    %p86 = scmp.ne.s32.totalorder %s78, %s80
    %p87 = scmp.eq.s32.totalorder %s14, 1
    %p88 = por %p86, %p87
    %p89 = scmp.ne.s32.totalorder %s80, %s81
    %p90 = scmp.eq.s32.totalorder %s14, 0
    %p91 = por %p89, %p90
    %p92 = scmp.ne.s32.totalorder %s80, %s81
    %p93 = scmp.eq.s32.totalorder %s15, 1
    %p94 = por %p92, %p93
    %p96 = scmp.ne.s32.totalorder %s81, %s95
    %p97 = scmp.eq.s32.totalorder %s15, 0
    %p98 = por %p96, %p97
    %s99 = ssub.s32 %s16, %s28
    %s100 = ssub.s32 %s17, %s24
    %s101 = sor.u32 %s99, %s100
    %p102 = scmp.eq.s32.totalorder %s101, 0
    %s104 = sadd.s32 %s103, 1
    %s105 = scalar_select %p102, %s103, %s104
    %p108 = pneg %p102
    %p109 = scmp.eq.s32.totalorder %s9, 1
    %p110 = por %p108, %p109
    %p111 = scmp.ne.s32.totalorder %s103, %s106
    %p112 = scmp.eq.s32.totalorder %s9, 0
    %p113 = por %p111, %p112
    %p114 = scmp.ne.s32.totalorder %s103, %s106
    %p115 = scmp.eq.s32.totalorder %s14, 1
    %p116 = por %p114, %p115
    %p117 = scmp.ne.s32.totalorder %s106, %s107
    %p118 = scmp.eq.s32.totalorder %s14, 0
    %p119 = por %p117, %p118
    %p120 = scmp.ne.s32.totalorder %s106, %s107
    %p121 = scmp.eq.s32.totalorder %s15, 1
    %p122 = por %p120, %p121
    %p124 = scmp.ne.s32.totalorder %s107, %s123
    %p125 = scmp.eq.s32.totalorder %s15, 0
    %p126 = por %p124, %p125
    %p127 = scmp.le.s32.totalorder 1, %s9
    %p128 = scmp.lt.s32.totalorder %s9, 3
    %p129 = pnand %p127, %p128
    %p130 = pneg %p129
    // Predicated region
    $region9: #{_forward.1} parent=5 // pred_check
      _
    $region10: #{_forward.1} parent=5 // pred_check_branch
      %132 = sbr.rel (%p129) target = $region12
    $region11: #{_forward.1} parent=5 // pred_region
      %s133 = ssub.s32 %s9, 1
      // Predicated region
      $region13: #{_forward.1} parent=11 // pred_check
        %p134 = pneg %p70
      $region14: #{_forward.1} parent=11 // pred_check_branch
        %136 = sbr.rel (%p134) target = $region16
      $region15: #{_forward.1} parent=11 // pred_region
        _
      $region16: #{_forward.1} parent=11 // pred_fallthru
        _
      // Predicated region
      $region17: #{_forward.1} parent=11 // pred_check
        %p137 = pneg %p91
      $region18: #{_forward.1} parent=11 // pred_check_branch
        %139 = sbr.rel (%p137) target = $region20
      $region19: #{_forward.1} parent=11 // pred_region
        _
      $region20: #{_forward.1} parent=11 // pred_fallthru
        _
    $region12: #{_forward.1} parent=5 // pred_fallthru
      _
    %p140 = scmp.lt.s32.totalorder %s9, 2
    // Predicated region
    $region21: #{_forward.1} parent=5 // pred_check
      %p141 = pneg %p140
    $region22: #{_forward.1} parent=5 // pred_check_branch
      %143 = sbr.rel (%p141) target = $region24
    $region23: #{_forward.1} parent=5 // pred_region
      // Predicated region
      $region25: #{_forward.1} parent=23 // pred_check
        %p144 = pneg %p43
      $region26: #{_forward.1} parent=23 // pred_check_branch
        %146 = sbr.rel (%p144) target = $region28
      $region27: #{_forward.1} parent=23 // pred_region
        %s147 = smul.u32 2, %s17
        %p148 = scmp.lt.s32.totalorder %s16, 1
        %s149 = scalar_select %p148, %s16, 1
        %p150 = scmp.lt.s32.totalorder %s147, 1
        %s151 = scalar_select %p150, %s147, 1
        %s152 = smul.addr %s149, 96
        %s153 = sadd.s32 %s151, %s152
        %s154 = smul.addr %s153, 8
        %s155 = scalar_lea.vmem %s0, %s154
        %s156 = smul.u32 2, %s17
      $region28: #{_forward.1} parent=23 // pred_fallthru
        _
    $region24: #{_forward.1} parent=5 // pred_fallthru
      _
    %p157 = scmp.le.s32.totalorder 1, %s9
    %p158 = scmp.lt.s32.totalorder %s9, 3
    %p159 = pnand %p157, %p158
    %p160 = pneg %p159
    // Predicated region
    $region29: #{_forward.1} parent=5 // pred_check
      _
    $region30: #{_forward.1} parent=5 // pred_check_branch
      %162 = sbr.rel (%p159) target = $region32
    $region31: #{_forward.1} parent=5 // pred_region
      %s163 = ssub.s32 %s9, 1
      %s164 = smul.u32 2, %s19
      %p165 = scmp.lt.s32.totalorder %s18, 1
      %s166 = scalar_select %p165, %s18, 1
      %p167 = scmp.lt.s32.totalorder %s164, 1
      %s168 = scalar_select %p167, %s164, 1
      %s169 = smul.addr %s166, 96
      %s170 = sadd.s32 %s168, %s169
      %s171 = smul.addr %s170, 8
      %s172 = scalar_lea.vmem %s0, %s171
      %p173 = pneg %p49
      %p174 = pneg %p46
      %p175 = pneg %p70
      %p176 = pneg %p67
      %p177 = pneg %p91
      %p178 = pneg %p88
      %p179 = pneg %p119
      %p180 = pneg %p116
      %s181 = smul.u32 2, %s19
      %p182 = scmp.lt.s32.totalorder %s18, 1
      %s183 = scalar_select %p182, %s18, 1
      %p184 = scmp.lt.s32.totalorder %s181, 1
      %s185 = scalar_select %p184, %s181, 1
      %s186 = smul.addr %s183, 4
      %s187 = sadd.s32 %s185, %s186
      %s188 = smul.addr %s187, 8
      %s189 = scalar_lea.vmem %s3, %s188
      %s190 = smul.u32 2, %s19
      %p191 = scmp.lt.s32.totalorder %s18, 1
      %s192 = scalar_select %p191, %s18, 1
      %p193 = scmp.lt.s32.totalorder %s190, 1
      %s194 = scalar_select %p193, %s190, 1
      %s195 = smul.addr %s192, 96
      %s196 = sadd.s32 %s194, %s195
      %s197 = smul.addr %s196, 8
      %s198 = scalar_lea.vmem %s0, %s197
      %s199 = smul.u32 2, %s19
      %s200 = smul.u32 2, %s19
      %p201 = scmp.lt.s32.totalorder %s18, 1
      %s202 = scalar_select %p201, %s18, 1
      %p203 = scmp.lt.s32.totalorder %s200, 1
      %s204 = scalar_select %p203, %s200, 1
      %s205 = smul.addr %s202, 4
      %s206 = sadd.s32 %s204, %s205
      %s207 = smul.addr %s206, 8
      %s208 = scalar_lea.vmem %s3, %s207
      %s209 = smul.u32 2, %s19
      %v210 = vld [vmem:[%s1] sm:$0xff]
      %v211 = vld [vmem:[%s1 + $0x8] sm:$0xff]
      %v212 = vld [vmem:[%s1 + $0x10] sm:$0xff]
      %v213 = vld [vmem:[%s1 + $0x18] sm:$0xff]
      %v214 = vld [vmem:[%s1 + $0x20] sm:$0xff]
      %v215 = vld [vmem:[%s1 + $0x28] sm:$0xff]
      %v216 = vld [vmem:[%s198] sm:$0xff]
      %v217 = vld [vmem:[%s198 + $0x8] sm:$0xff]
      %v218 = vld [vmem:[%s198 + $0x10] sm:$0xff]
      %v219 = vld [vmem:[%s198 + $0x18] sm:$0xff]
      %v220 = vld [vmem:[%s198 + $0x20] sm:$0xff]
      %v221 = vld [vmem:[%s198 + $0x28] sm:$0xff]
      %v222 = vld [vmem:[%s198 + $0x30] sm:$0xff]
      %v223 = vld [vmem:[%s198 + $0x38] sm:$0xff]
      %v224 = vld [vmem:[%s198 + $0x40] sm:$0xff]
      %v225 = vld [vmem:[%s198 + $0x48] sm:$0xff]
      %v226 = vld [vmem:[%s198 + $0x50] sm:$0xff]
      %v227 = vld [vmem:[%s198 + $0x58] sm:$0xff]
      %v228 = vld [vmem:[%s198 + $0x60] sm:$0xff]
      %v229 = vld [vmem:[%s198 + $0x68] sm:$0xff]
      %v230 = vld [vmem:[%s198 + $0x70] sm:$0xff]
      %v231 = vld [vmem:[%s198 + $0x78] sm:$0xff]
      %v232 = vld [vmem:[%s198 + $0x80] sm:$0xff]
      %v233 = vld [vmem:[%s198 + $0x88] sm:$0xff]
      %v234 = vld [vmem:[%s198 + $0x90] sm:$0xff]
      %v235 = vld [vmem:[%s198 + $0x98] sm:$0xff]
      %v236 = vld [vmem:[%s198 + $0xa0] sm:$0xff]
      %v237 = vld [vmem:[%s198 + $0xa8] sm:$0xff]
      %v238 = vld [vmem:[%s198 + $0xb0] sm:$0xff]
      %v239 = vld [vmem:[%s198 + $0xb8] sm:$0xff]
      %v240 = vld [vmem:[%s198 + $0xc0] sm:$0xff]
      %v241 = vld [vmem:[%s198 + $0xc8] sm:$0xff]
      %v242 = vld [vmem:[%s198 + $0xd0] sm:$0xff]
      %v243 = vld [vmem:[%s198 + $0xd8] sm:$0xff]
      %v244 = vld [vmem:[%s198 + $0xe0] sm:$0xff]
      %v245 = vld [vmem:[%s198 + $0xe8] sm:$0xff]
      %v246 = vld [vmem:[%s198 + $0xf0] sm:$0xff]
      %v247 = vld [vmem:[%s198 + $0xf8] sm:$0xff]
      %v248 = vld [vmem:[%s198 + $0x100] sm:$0xff]
      %v249 = vld [vmem:[%s198 + $0x108] sm:$0xff]
      %v250 = vld [vmem:[%s198 + $0x110] sm:$0xff]
      %v251 = vld [vmem:[%s198 + $0x118] sm:$0xff]
      %v252 = vld [vmem:[%s198 + $0x120] sm:$0xff]
      %v253 = vld [vmem:[%s198 + $0x128] sm:$0xff]
      %v254 = vld [vmem:[%s198 + $0x130] sm:$0xff]
      %v255 = vld [vmem:[%s198 + $0x138] sm:$0xff]
      %v256 = vld [vmem:[%s198 + $0x140] sm:$0xff]
      %v257 = vld [vmem:[%s198 + $0x148] sm:$0xff]
      %v258 = vld [vmem:[%s198 + $0x150] sm:$0xff]
      %v259 = vld [vmem:[%s198 + $0x158] sm:$0xff]
      %v260 = vld [vmem:[%s198 + $0x160] sm:$0xff]
      %v261 = vld [vmem:[%s198 + $0x168] sm:$0xff]
      %v262 = vld [vmem:[%s198 + $0x170] sm:$0xff]
      %v263 = vld [vmem:[%s198 + $0x178] sm:$0xff]
      %v264 = vld [vmem:[%s198 + $0x180] sm:$0xff]
      %v265 = vld [vmem:[%s198 + $0x188] sm:$0xff]
      %v266 = vld [vmem:[%s198 + $0x190] sm:$0xff]
      %v267 = vld [vmem:[%s198 + $0x198] sm:$0xff]
      %v268 = vld [vmem:[%s198 + $0x1a0] sm:$0xff]
      %v269 = vld [vmem:[%s198 + $0x1a8] sm:$0xff]
      %v270 = vld [vmem:[%s198 + $0x1b0] sm:$0xff]
      %v271 = vld [vmem:[%s198 + $0x1b8] sm:$0xff]
      %v272 = vld [vmem:[%s198 + $0x1c0] sm:$0xff]
      %v273 = vld [vmem:[%s198 + $0x1c8] sm:$0xff]
      %v274 = vld [vmem:[%s198 + $0x1d0] sm:$0xff]
      %v275 = vld [vmem:[%s198 + $0x1d8] sm:$0xff]
      %v276 = vld [vmem:[%s198 + $0x1e0] sm:$0xff]
      %v277 = vld [vmem:[%s198 + $0x1e8] sm:$0xff]
      %v278 = vld [vmem:[%s198 + $0x1f0] sm:$0xff]
      %v279 = vld [vmem:[%s198 + $0x1f8] sm:$0xff]
      %v280 = vld [vmem:[%s198 + $0x200] sm:$0xff]
      %v281 = vld [vmem:[%s198 + $0x208] sm:$0xff]
      %v282 = vld [vmem:[%s198 + $0x210] sm:$0xff]
      %v283 = vld [vmem:[%s198 + $0x218] sm:$0xff]
      %v284 = vld [vmem:[%s198 + $0x220] sm:$0xff]
      %v285 = vld [vmem:[%s198 + $0x228] sm:$0xff]
      %v286 = vld [vmem:[%s198 + $0x230] sm:$0xff]
      %v287 = vld [vmem:[%s198 + $0x238] sm:$0xff]
      %v288 = vld [vmem:[%s198 + $0x240] sm:$0xff]
      %v289 = vld [vmem:[%s198 + $0x248] sm:$0xff]
      %v290 = vld [vmem:[%s198 + $0x250] sm:$0xff]
      %v291 = vld [vmem:[%s198 + $0x258] sm:$0xff]
      %v292 = vld [vmem:[%s198 + $0x260] sm:$0xff]
      %v293 = vld [vmem:[%s198 + $0x268] sm:$0xff]
      %v294 = vld [vmem:[%s198 + $0x270] sm:$0xff]
      %v295 = vld [vmem:[%s198 + $0x278] sm:$0xff]
      %v296 = vld [vmem:[%s198 + $0x280] sm:$0xff]
      %v297 = vld [vmem:[%s198 + $0x288] sm:$0xff]
      %v298 = vld [vmem:[%s198 + $0x290] sm:$0xff]
      %v299 = vld [vmem:[%s198 + $0x298] sm:$0xff]
      %v300 = vld [vmem:[%s198 + $0x2a0] sm:$0xff]
      %v301 = vld [vmem:[%s198 + $0x2a8] sm:$0xff]
      %v302 = vld [vmem:[%s198 + $0x2b0] sm:$0xff]
      %v303 = vld [vmem:[%s198 + $0x2b8] sm:$0xff]
      %v304 = vld [vmem:[%s198 + $0x2c0] sm:$0xff]
      %v305 = vld [vmem:[%s198 + $0x2c8] sm:$0xff]
      %v306 = vld [vmem:[%s198 + $0x2d0] sm:$0xff]
      %v307 = vld [vmem:[%s198 + $0x2d8] sm:$0xff]
      %v308 = vld [vmem:[%s198 + $0x2e0] sm:$0xff]
      %v309 = vld [vmem:[%s198 + $0x2e8] sm:$0xff]
      %v310 = vld [vmem:[%s198 + $0x2f0] sm:$0xff]
      %v311 = vld [vmem:[%s198 + $0x2f8] sm:$0xff]
      %v312 = vld [vmem:[%s2] sm:$0xff]
      %v313 = vld [vmem:[%s2 + $0x8] sm:$0xff]
      %315 = vset.pattern.permute.xlu0 0
      %316 = vperm.xlu0 %315, %v312
      %v317 = vpop.permute.xlu0 %316
      %320 = vset.pattern.permute.xlu0 0
      %321 = vperm.xlu0 %320, %v313
      %v322 = vpop.permute.xlu0 %321
      %324 = vmatprep.subr.mxu0 %v217
      %325 = vmatpush1.msra.mxu0 %v216
      %326 = vmatprep.subr.mxu0 %v219
      %327 = vmatpush1.msra.mxu0 %v218
      %328 = vmatprep.subr.mxu0 %v221
      %329 = vmatpush1.msra.mxu0 %v220
      %330 = vmatprep.subr.mxu0 %v223
      %331 = vmatpush1.msra.mxu0 %v222
      %332 = vmatprep.subr.mxu0 %v225
      %333 = vmatpush1.msra.mxu0 %v224
      %334 = vmatprep.subr.mxu0 %v227
      %335 = vmatpush1.msra.mxu0 %v226
      %336 = vmatprep.subr.mxu0 %v229
      %337 = vmatpush1.msra.mxu0 %v228
      %338 = vmatprep.subr.mxu0 %v231
      %339 = vmatpush1.msra.mxu0 %v230
      %340 = vmatprep.subr.mxu0 %v233
      %341 = vmatpush1.msra.mxu0 %v232
      %342 = vmatprep.subr.mxu0 %v235
      %343 = vmatpush1.msra.mxu0 %v234
      %344 = vmatprep.subr.mxu0 %v237
      %345 = vmatpush1.msra.mxu0 %v236
      %346 = vmatprep.subr.mxu0 %v239
      %347 = vmatpush1.msra.mxu0 %v238
      %348 = vmatprep.subr.mxu0 %v241
      %349 = vmatpush1.msra.mxu0 %v240
      %350 = vmatprep.subr.mxu0 %v243
      %351 = vmatpush1.msra.mxu0 %v242
      %352 = vmatprep.subr.mxu0 %v245
      %353 = vmatpush1.msra.mxu0 %v244
      %354 = vmatprep.subr.mxu0 %v247
      %355 = vmatpush1.msra.mxu0 %v246
      %356 = vmatprep.subr.mxu0 %v249
      %357 = vmatpush1.msra.mxu0 %v248
      %358 = vmatprep.subr.mxu0 %v251
      %359 = vmatpush1.msra.mxu0 %v250
      %360 = vmatprep.subr.mxu0 %v253
      %361 = vmatpush1.msra.mxu0 %v252
      %362 = vmatprep.subr.mxu0 %v255
      %363 = vmatpush1.msra.mxu0 %v254
      %364 = vmatprep.subr.mxu0 %v257
      %365 = vmatpush1.msra.mxu0 %v256
      %366 = vmatprep.subr.mxu0 %v259
      %367 = vmatpush1.msra.mxu0 %v258
      %368 = vmatprep.subr.mxu0 %v261
      %369 = vmatpush1.msra.mxu0 %v260
      %370 = vmatprep.subr.mxu0 %v263
      %371 = vmatpush1.msra.mxu0 %v262
      %372 = vmatprep.subr.mxu0 %v265
      %373 = vmatpush1.msra.mxu0 %v264
      %374 = vmatprep.subr.mxu0 %v267
      %375 = vmatpush1.msra.mxu0 %v266
      %376 = vmatprep.subr.mxu0 %v269
      %377 = vmatpush1.msra.mxu0 %v268
      %378 = vmatprep.subr.mxu0 %v271
      %379 = vmatpush1.msra.mxu0 %v270
      %380 = vmatprep.subr.mxu0 %v273
      %381 = vmatpush1.msra.mxu0 %v272
      %382 = vmatprep.subr.mxu0 %v275
      %383 = vmatpush1.msra.mxu0 %v274
      %384 = vmatprep.subr.mxu0 %v277
      %385 = vmatpush1.msra.mxu0 %v276
      %386 = vmatprep.subr.mxu0 %v279
      %387 = vmatpush1.msra.mxu0 %v278
      %388 = vmatprep.mubr.f32.mxu0 %v211
      %389 = vmatmul.mubr.f32.gmra.mrb[0].mxu0 %v210
      %v390 = vpop.f32.mrb[0].mxu0
      %v391 = vadd.f32 %v317, %v390
      %v392 = vpop.f32.mrb[0].mxu0
      %v393 = vadd.f32 %v317, %v392
      %394 = vmatprep.mubr.f32.mxu0 %v214
      %395 = vmatmul.mubr.f32.gmra.mrb[0].mxu0 %v213
      %v396 = vpop.f32.mrb[0].mxu0
      %v397 = vadd.f32 %v322, %v396
      %v398 = vpop.f32.mrb[0].mxu0
      %v399 = vadd.f32 %v322, %v398
      %400 = vdwg.mxu0
      %401 = vmatprep.subr.mxu0 %v281
      %402 = vmatpush1.msra.mxu0 %v280
      %403 = vmatprep.subr.mxu0 %v283
      %404 = vmatpush1.msra.mxu0 %v282
      %405 = vmatprep.subr.mxu0 %v285
      %406 = vmatpush1.msra.mxu0 %v284
      %407 = vmatprep.subr.mxu0 %v287
      %408 = vmatpush1.msra.mxu0 %v286
      %409 = vmatprep.subr.mxu0 %v289
      %410 = vmatpush1.msra.mxu0 %v288
      %411 = vmatprep.subr.mxu0 %v291
      %412 = vmatpush1.msra.mxu0 %v290
      %413 = vmatprep.subr.mxu0 %v293
      %414 = vmatpush1.msra.mxu0 %v292
      %415 = vmatprep.subr.mxu0 %v295
      %416 = vmatpush1.msra.mxu0 %v294
      %417 = vmatprep.subr.mxu0 %v297
      %418 = vmatpush1.msra.mxu0 %v296
      %419 = vmatprep.subr.mxu0 %v299
      %420 = vmatpush1.msra.mxu0 %v298
      %421 = vmatprep.subr.mxu0 %v301
      %422 = vmatpush1.msra.mxu0 %v300
      %423 = vmatprep.subr.mxu0 %v303
      %424 = vmatpush1.msra.mxu0 %v302
      %425 = vmatprep.subr.mxu0 %v305
      %426 = vmatpush1.msra.mxu0 %v304
      %427 = vmatprep.subr.mxu0 %v307
      %428 = vmatpush1.msra.mxu0 %v306
      %429 = vmatprep.subr.mxu0 %v309
      %430 = vmatpush1.msra.mxu0 %v308
      %431 = vmatprep.subr.mxu0 %v311
      %432 = vmatpush1.msra.mxu0 %v310
      %433 = vmatprep.subr.mxu0 0.0
      %434 = vmatpush1.msra.mxu0 0.0
      %435 = vmatprep.subr.mxu0 0.0
      %436 = vmatpush1.msra.mxu0 0.0
      %437 = vmatprep.subr.mxu0 0.0
      %438 = vmatpush1.msra.mxu0 0.0
      %439 = vmatprep.subr.mxu0 0.0
      %440 = vmatpush1.msra.mxu0 0.0
      %441 = vmatprep.subr.mxu0 0.0
      %442 = vmatpush1.msra.mxu0 0.0
      %443 = vmatprep.subr.mxu0 0.0
      %444 = vmatpush1.msra.mxu0 0.0
      %445 = vmatprep.subr.mxu0 0.0
      %446 = vmatpush1.msra.mxu0 0.0
      %447 = vmatprep.subr.mxu0 0.0
      %448 = vmatpush1.msra.mxu0 0.0
      %449 = vmatprep.subr.mxu0 0.0
      %450 = vmatpush1.msra.mxu0 0.0
      %451 = vmatprep.subr.mxu0 0.0
      %452 = vmatpush1.msra.mxu0 0.0
      %453 = vmatprep.subr.mxu0 0.0
      %454 = vmatpush1.msra.mxu0 0.0
      %455 = vmatprep.subr.mxu0 0.0
      %456 = vmatpush1.msra.mxu0 0.0
      %457 = vmatprep.subr.mxu0 0.0
      %458 = vmatpush1.msra.mxu0 0.0
      %459 = vmatprep.subr.mxu0 0.0
      %460 = vmatpush1.msra.mxu0 0.0
      %461 = vmatprep.subr.mxu0 0.0
      %462 = vmatpush1.msra.mxu0 0.0
      %463 = vmatprep.subr.mxu0 0.0
      %464 = vmatpush1.msra.mxu0 0.0
      %465 = vmatprep.mubr.f32.mxu0 0.0
      %466 = vmatmul.mubr.f32.gmra.mrb[0].mxu0 %v212
      %v467 = vpop.f32.mrb[0].mxu0
      %v468 = vadd.f32 %v391, %v467
      %v469 = vpop.f32.mrb[0].mxu0
      %v470 = vadd.f32 %v393, %v469
      %471 = vmatprep.mubr.f32.mxu0 0.0
      %472 = vmatmul.mubr.f32.gmra.mrb[0].mxu0 %v215
      %v473 = vpop.f32.mrb[0].mxu0
      %v474 = vadd.f32 %v397, %v473
      %v475 = vpop.f32.mrb[0].mxu0
      %v476 = vadd.f32 %v399, %v475
      %477 = vdwg.mxu0
      %478 = vst [vmem:[%s208] sm:$0xff] %v468
      %479 = vst [vmem:[%s208 + $0x8] sm:$0xff] %v470
      %480 = vst [vmem:[%s208 + $0x10] sm:$0xff] %v474
      %481 = vst [vmem:[%s208 + $0x18] sm:$0xff] %v476
      %s482 = smul.u32 2, %s19
      %p483 = scmp.lt.s32.totalorder %s18, 1
      %s484 = scalar_select %p483, %s18, 1
      %p485 = scmp.lt.s32.totalorder %s482, 1
      %s486 = scalar_select %p485, %s482, 1
      %s487 = smul.addr %s484, 4
      %s488 = sadd.s32 %s486, %s487
      %s489 = smul.addr %s488, 8
      %s490 = scalar_lea.vmem %s3, %s489
      // Predicated region
      $region33: #{_forward.1} parent=31 // pred_check
        %p491 = pneg %p116
      $region34: #{_forward.1} parent=31 // pred_check_branch
        %493 = sbr.rel (%p491) target = $region36
      $region35: #{_forward.1} parent=31 // pred_region
        %s494 = smul.u32 2, %s19
      $region36: #{_forward.1} parent=31 // pred_fallthru
        _
    $region32: #{_forward.1} parent=5 // pred_fallthru
      _
    %p495 = scmp.le.s32.totalorder 2, %s9
    // Predicated region
    $region37: #{_forward.1} parent=5 // pred_check
      %p496 = pneg %p495
    $region38: #{_forward.1} parent=5 // pred_check_branch
      %498 = sbr.rel (%p496) target = $region40
    $region39: #{_forward.1} parent=5 // pred_region
      %s499 = ssub.s32 %s9, 2
      // Predicated region
      $region41: #{_forward.1} parent=39 // pred_check
        %p500 = pneg %p122
      $region42: #{_forward.1} parent=39 // pred_check_branch
        %502 = sbr.rel (%p500) target = $region44
      $region43: #{_forward.1} parent=39 // pred_region
        %s503 = smul.u32 2, %s21
        %p504 = scmp.lt.s32.totalorder %s20, 1
        %s505 = scalar_select %p504, %s20, 1
        %p506 = scmp.lt.s32.totalorder %s503, 1
        %s507 = scalar_select %p506, %s503, 1
        %s508 = smul.addr %s505, 4
        %s509 = sadd.s32 %s507, %s508
        %s510 = smul.addr %s509, 8
        %s511 = scalar_lea.vmem %s3, %s510
      $region44: #{_forward.1} parent=39 // pred_fallthru
        _
    $region40: #{_forward.1} parent=5 // pred_fallthru
      _
  $region6: #{_forward.1} parent=0 // loop_footer
    %s13 = sadd.s32 1, %s9
  $region7: #{_forward.1} parent=0 // loop_footer_branch
    %8 = sbr.rel target = $region3
  $region8: #{_forward.1} parent=0 // loop_exit
    _

</llo_original>
